<compile_context>
chip_gen: v5e
topology: v5e:2x2
jax: 0.10.0
libtpu: 0.0.40
codegen_flags: <defaults>
</compile_context>

<pallas_src>
import functools

import jax
import jax.numpy as jnp
import numpy as np
from jax import lax
from jax.experimental import pallas as pl
from jax.experimental.pallas import tpu as pltpu

_F32_TEMPS = 12  # conservative count of live (Bt, HW) f32 temporaries


def _combined_loss_kernel(edge_ref, logits_ref, tgt_ref, res_ref, *,
                          tau, epsilon, W, H, binary_targets):
    x = logits_ref[0].astype(jnp.float32)          # (Bt, HW) logits
    t = tgt_ref[0].astype(jnp.float32)             # (Bt, HW) targets
    Bt, HW = x.shape

    # Shared exponential: e = exp(-|x|) feeds sigmoid(x) and the BCE softplus.
    e = jnp.exp(-jnp.abs(x))
    d = 1.0 + e
    r = pl.reciprocal(d, approx=True)
    r = r * (2.0 - d * r)                          # one Newton step (VPU only)
    p = jnp.where(x >= 0.0, r, e * r)              # sigmoid(x)

    # 3x3 max-pool dilation on the flattened pixel axis.  Targets are
    # non-negative, so zero "padding" (masking) is equivalent to -inf padding.
    edges = edge_ref[...]                          # (4, HW) {0,1} boundary masks
    if W >= 2:
        left = pltpu.roll(t, 1, axis=1) * edges[0:1]        # t[.., k-1]
        right = pltpu.roll(t, HW - 1, axis=1) * edges[1:2]  # t[.., k+1]
        rmax = jnp.maximum(jnp.maximum(left, t), right)
    else:
        rmax = t
    if H >= 2:
        up = pltpu.roll(rmax, W, axis=1) * edges[2:3]           # rmax[.., k-W]
        down = pltpu.roll(rmax, HW - W, axis=1) * edges[3:4]    # rmax[.., k+W]
        dilated = jnp.maximum(jnp.maximum(up, rmax), down)
    else:
        dilated = rmax

    if binary_targets:
        mask = dilated                             # already {0, 1}
    else:
        mask = (dilated > 0.5).astype(jnp.float32)

    mask_sum = jnp.sum(mask, axis=1, keepdims=True)                  # (Bt, 1)
    s = jnp.sum(jnp.exp(tau * p) * mask, axis=1, keepdims=True)      # (Bt, 1)
    sm = (1.0 / tau) * jnp.log(s + epsilon)
    sm = jnp.where(mask_sum > 0.0, sm, 0.0)
    loss_term = -jnp.log(sm + epsilon)

    # BCEWithLogits (stable form), reusing e: log(1 + exp(-|x|)) = log(1 + e).
    bce_sum = jnp.sum(jnp.maximum(x, 0.0) - x * t + jnp.log(1.0 + e),
                      axis=1, keepdims=True)                         # (Bt, 1)

    # Lane-dense output slab: lane 0 = loss term, 1 = mask sum, 2 = bce sum.
    lane = lax.broadcasted_iota(jnp.int32, (Bt, 128), 1)
    res_ref[0] = jnp.where(
        lane == 0, loss_term,
        jnp.where(lane == 1, mask_sum,
                  jnp.where(lane == 2, bce_sum, 0.0)))


def _vmem_capacity_bytes():
    try:
        info = pltpu.get_tpu_info()
        cap = getattr(info, "vmem_capacity_bytes", None)
        if cap:
            return int(cap)
    except Exception:
        pass
    return 64 << 20  # conservative default (v7x per-TensorCore VMEM)


def _pick_images_per_block(B, HW, budget_pixels):
    """Largest divisor of B whose tile fits the VMEM-derived pixel budget,
    preferring an even number of grid steps (>=2) for megacore balance."""
    divisors = [d for d in range(1, B + 1) if B % d == 0]
    fitting = [d for d in divisors if d * HW <= budget_pixels]
    if not fitting:
        return 1  # TODO(synk): needs pixel-axis tiling with a 1-row halo
    def key(d):
        nblk = B // d
        return (nblk >= 2, nblk % 2 == 0, d % 8 == 0, d)
    return max(fitting, key=key)


def combined_loss(outputs, targets, *, tau=10.0, epsilon=1e-6, alpha=0.5):
    """outputs: (B, 1, H, W) logits, targets: (B, 1, H, W) (binary or soft)."""
    B, C, H, W = outputs.shape
    assert C == 1, "CombinedLoss expects a single-channel prediction map"
    HW = H * W

    binary_targets = (jnp.issubdtype(targets.dtype, jnp.bool_)
                      or jnp.issubdtype(targets.dtype, jnp.integer))

    x = outputs.reshape(B, HW)                     # native dtype (f32 / bf16)
    t = targets.reshape(B, HW)
    if jnp.issubdtype(t.dtype, jnp.bool_):
        t = t.astype(jnp.int8)                     # keep the HBM stream narrow

    bpp = x.dtype.itemsize + t.dtype.itemsize
    vmem_cap = _vmem_capacity_bytes()
    # Per-pixel VMEM cost: double-buffered input streams + live f32 temps.
    per_pixel_bytes = 2 * bpp + _F32_TEMPS * 4
    budget_pixels = max(HW, int(0.70 * vmem_cap) // per_pixel_bytes)

    bt = _pick_images_per_block(B, HW, budget_pixels)
    nblk = B // bt

    x3 = x.reshape(nblk, bt, HW)                   # contiguous (free) reshape
    t3 = t.reshape(nblk, bt, HW)

    # Precomputed {0,1} boundary masks for the 4 dilation shifts (host-side).
    col = np.arange(HW) % W
    row = np.arange(HW) // W
    edges = jnp.asarray(np.stack([col >= 1, col <= W - 2,
                                  row >= 1, row <= H - 2]).astype(np.float32))

    kernel = functools.partial(_combined_loss_kernel, tau=float(tau),
                               epsilon=float(epsilon), W=W, H=H,
                               binary_targets=binary_targets)

    need = (2 * bt * HW * bpp + _F32_TEMPS * bt * HW * 4
            + 2 * 4 * HW * 4 + 2 * bt * 128 * 4 + (2 << 20))
    vmem_limit = int(min(max(need, 32 << 20), int(0.85 * vmem_cap)))

    cost = pl.CostEstimate(
        flops=40 * B * HW,
        transcendentals=3 * B * HW,
        bytes_accessed=B * HW * bpp + nblk * 4 * HW * 4 + B * 128 * 4)

    res = pl.pallas_call(
        kernel,
        out_shape=jax.ShapeDtypeStruct((nblk, bt, 128), jnp.float32),
        grid_spec=pltpu.PrefetchScalarGridSpec(
            num_scalar_prefetch=0,
            grid=(nblk,),
            # TODO(synk): if per-step compute stays shorter than DMA issue
            # latency for tiny inputs, sweep pipeline_mode=pl.Buffered(3).
            in_specs=[
                pl.BlockSpec((4, HW), lambda i: (0, 0)),
                pl.BlockSpec((1, bt, HW), lambda i: (i, 0, 0)),
                pl.BlockSpec((1, bt, HW), lambda i: (i, 0, 0)),
            ],
            out_specs=pl.BlockSpec((1, bt, 128), lambda i: (i, 0, 0)),
        ),
        compiler_params=pltpu.CompilerParams(
            dimension_semantics=("parallel",),
            vmem_limit_bytes=vmem_limit),
        cost_estimate=cost,
    )(edges, x3, t3)

    res = res.reshape(B, 128)
    loss_b = res[:, 0]     # per-image -log term
    msum_b = res[:, 1]     # per-image dilated-mask sum
    bce_b = res[:, 2]      # per-image BCE sum

    # Tiny scalar finalize (matches the PyTorch control flow).
    valid = msum_b > 0.0
    n_valid = jnp.sum(valid.astype(jnp.float32))
    loss1 = jnp.where(
        n_valid > 0.0,
        jnp.sum(jnp.where(valid, loss_b, 0.0)) / jnp.maximum(n_valid, 1.0),
        jnp.mean(loss_b))
    loss2 = jnp.sum(bce_b) / float(B * C * H * W)
    return alpha * loss1 + (1.0 - alpha) * loss2


def _reference(outputs, targets, *, tau=10.0, epsilon=1e-6, alpha=0.5):
    """Pure-JAX reference mirroring the PyTorch module."""
    x = outputs[:, 0].astype(jnp.float32)
    t = targets[:, 0].astype(jnp.float32)
    p = jax.nn.sigmoid(x)
    dil = lax.reduce_window(t, -jnp.inf, lax.max, (1, 3, 3), (1, 1, 1),
                            [(0, 0), (1, 1), (1, 1)])
    mask = (dil > 0.5).astype(jnp.float32)
    msum = mask.sum(axis=(1, 2))
    sm = (1.0 / tau) * jnp.log(jnp.sum(jnp.exp(tau * p) * mask, axis=(1, 2))
                               + epsilon)
    sm = jnp.where(msum > 0, sm, 0.0)
    loss = -jnp.log(sm + epsilon)
    valid = msum > 0
    nv = jnp.sum(valid.astype(jnp.float32))
    loss1 = jnp.where(nv > 0,
                      jnp.sum(jnp.where(valid, loss, 0.0)) / jnp.maximum(nv, 1.0),
                      jnp.mean(loss))
    bce = jnp.maximum(x, 0.0) - x * t + jnp.log1p(jnp.exp(-jnp.abs(x)))
    loss2 = jnp.mean(bce)
    return alpha * loss1 + (1.0 - alpha) * loss2


if __name__ == "__main__":
    # Small shapes consistent with the module: NCHW (B, 1, H, W).
    # B=4 so the multi-image-per-step path (bt=2, grid=(2,)) is exercised.
    B, C, H, W = 4, 1, 16, 16
    key = jax.random.PRNGKey(0)
    k_out, k_tgt = jax.random.split(key)
    outputs = jax.random.normal(k_out, (B, C, H, W), dtype=jnp.float32)
    targets_f32 = (jax.random.uniform(k_tgt, (B, C, H, W)) > 0.7).astype(jnp.float32)

    result = jax.block_until_ready(
        combined_loss(outputs, targets_f32, tau=10.0, epsilon=1e-6, alpha=0.5))
    ref = jax.block_until_ready(
        _reference(outputs, targets_f32, tau=10.0, epsilon=1e-6, alpha=0.5))
    np.testing.assert_allclose(np.asarray(result), np.asarray(ref),
                               rtol=1e-3, atol=1e-3)

    # Narrow-dtype streaming path: bf16 logits + bool targets (-> int8 stream,
    # binary-target fast path with no threshold select).
    outputs_bf16 = outputs.astype(jnp.bfloat16)
    targets_bool = targets_f32.astype(jnp.bool_)
    result2 = jax.block_until_ready(
        combined_loss(outputs_bf16, targets_bool, tau=10.0, epsilon=1e-6, alpha=0.5))
    ref2 = jax.block_until_ready(
        _reference(outputs_bf16.astype(jnp.float32), targets_f32,
                   tau=10.0, epsilon=1e-6, alpha=0.5))
    np.testing.assert_allclose(np.asarray(result2), np.asarray(ref2),
                               rtol=1e-3, atol=1e-3)

    print("KERNEL_OK")
</pallas_src>

<mosaic_0001>
module attributes {stable_mosaic.version = 11 : i64} {
  func.func @_combined_loss_kernel(%arg0: i32, %arg1: memref<4x256xf32, #tpu.memory_space<vmem>>, %arg2: memref<1x2x256xf32, #tpu.memory_space<vmem>>, %arg3: memref<1x2x256xf32, #tpu.memory_space<vmem>>, %arg4: memref<1x2x128xf32, #tpu.memory_space<vmem>>) attributes {dimension_semantics = [#tpu.dimension_semantics<parallel>], iteration_bounds = array<i64: 2>, scalar_prefetch = 0 : i64, scratch_operands = 0 : i64, tpu.core_type = #tpu.core_type<tc>, window_params = [{pipeline_mode = #tpu.pipeline_mode<synchronous>, transform_indices = @transform_0, window_bounds = array<i64: 4, 256>}, {transform_indices = @transform_1, window_bounds = array<i64: 1, 2, 256>}, {transform_indices = @transform_2, window_bounds = array<i64: 1, 2, 256>}, {transform_indices = @transform_3, window_bounds = array<i64: 1, 2, 128>}]} {
    %c0 = arith.constant 0 : index
    %c0_0 = arith.constant 0 : index
    %c0_1 = arith.constant 0 : index
    %0 = vector.load %arg2[%c0, %c0_0, %c0_1] : memref<1x2x256xf32, #tpu.memory_space<vmem>>, vector<1x2x256xf32>
    %1 = vector.shape_cast %0 : vector<1x2x256xf32> to vector<2x256xf32>
    %c0_2 = arith.constant 0 : index
    %c0_3 = arith.constant 0 : index
    %c0_4 = arith.constant 0 : index
    %2 = vector.load %arg3[%c0_2, %c0_3, %c0_4] : memref<1x2x256xf32, #tpu.memory_space<vmem>>, vector<1x2x256xf32>
    %3 = vector.shape_cast %2 : vector<1x2x256xf32> to vector<2x256xf32>
    %4 = math.absf %1 : vector<2x256xf32>
    %cst = arith.constant 0.000000e+00 : f32
    %5 = vector.broadcast %cst : f32 to vector<2x256xf32>
    %6 = arith.subf %5, %4 : vector<2x256xf32>
    %7 = math.exp %6 : vector<2x256xf32>
    %cst_5 = arith.constant 1.000000e+00 : f32
    %8 = vector.broadcast %cst_5 : f32 to vector<2x256xf32>
    %9 = arith.addf %8, %7 : vector<2x256xf32>
    %10 = tpu.reciprocal %9 {approx = true} : vector<2x256xf32> -> vector<2x256xf32>
    %11 = arith.mulf %9, %10 : vector<2x256xf32>
    %cst_6 = arith.constant 2.000000e+00 : f32
    %12 = vector.broadcast %cst_6 : f32 to vector<2x256xf32>
    %13 = arith.subf %12, %11 : vector<2x256xf32>
    %14 = arith.mulf %10, %13 : vector<2x256xf32>
    %cst_7 = arith.constant 0.000000e+00 : f32
    %15 = vector.broadcast %cst_7 : f32 to vector<2x256xf32>
    %16 = arith.cmpf oge, %1, %15 : vector<2x256xf32>
    %17 = arith.mulf %7, %14 : vector<2x256xf32>
    %18 = arith.select %16, %14, %17 : vector<2x256xi1>, vector<2x256xf32>
    %c0_8 = arith.constant 0 : index
    %c0_9 = arith.constant 0 : index
    %19 = vector.load %arg1[%c0_8, %c0_9] : memref<4x256xf32, #tpu.memory_space<vmem>>, vector<4x256xf32>
    %c1_i32 = arith.constant 1 : i32
    %20 = tpu.dynamic_rotate %3 by %c1_i32 dim 1 : vector<2x256xf32>, i32 -> vector<2x256xf32>
    %21 = vector.extract_strided_slice %19 {offsets = [0, 0], sizes = [1, 256], strides = [1, 1]} : vector<4x256xf32> to vector<1x256xf32>
    %22 = vector.broadcast %21 : vector<1x256xf32> to vector<2x256xf32>
    %23 = arith.mulf %20, %22 : vector<2x256xf32>
    %c255_i32 = arith.constant 255 : i32
    %24 = tpu.dynamic_rotate %3 by %c255_i32 dim 1 : vector<2x256xf32>, i32 -> vector<2x256xf32>
    %25 = vector.extract_strided_slice %19 {offsets = [1, 0], sizes = [1, 256], strides = [1, 1]} : vector<4x256xf32> to vector<1x256xf32>
    %26 = vector.broadcast %25 : vector<1x256xf32> to vector<2x256xf32>
    %27 = arith.mulf %24, %26 : vector<2x256xf32>
    %28 = arith.maximumf %23, %3 : vector<2x256xf32>
    %29 = arith.maximumf %28, %27 : vector<2x256xf32>
    %c16_i32 = arith.constant 16 : i32
    %30 = tpu.dynamic_rotate %29 by %c16_i32 dim 1 : vector<2x256xf32>, i32 -> vector<2x256xf32>
    %31 = vector.extract_strided_slice %19 {offsets = [2, 0], sizes = [1, 256], strides = [1, 1]} : vector<4x256xf32> to vector<1x256xf32>
    %32 = vector.broadcast %31 : vector<1x256xf32> to vector<2x256xf32>
    %33 = arith.mulf %30, %32 : vector<2x256xf32>
    %c240_i32 = arith.constant 240 : i32
    %34 = tpu.dynamic_rotate %29 by %c240_i32 dim 1 : vector<2x256xf32>, i32 -> vector<2x256xf32>
    %35 = vector.extract_strided_slice %19 {offsets = [3, 0], sizes = [1, 256], strides = [1, 1]} : vector<4x256xf32> to vector<1x256xf32>
    %36 = vector.broadcast %35 : vector<1x256xf32> to vector<2x256xf32>
    %37 = arith.mulf %34, %36 : vector<2x256xf32>
    %38 = arith.maximumf %33, %29 : vector<2x256xf32>
    %39 = arith.maximumf %38, %37 : vector<2x256xf32>
    %cst_10 = arith.constant 5.000000e-01 : f32
    %40 = vector.broadcast %cst_10 : f32 to vector<2x256xf32>
    %41 = arith.cmpf ogt, %39, %40 : vector<2x256xf32>
    %42 = arith.extui %41 : vector<2x256xi1> to vector<2x256xi32>
    %43 = arith.sitofp %42 : vector<2x256xi32> to vector<2x256xf32>
    %cst_11 = arith.constant dense<0.000000e+00> : vector<2xf32>
    %44 = vector.multi_reduction <add>, %43, %cst_11 [1] : vector<2x256xf32> to vector<2xf32>
    %45 = vector.shape_cast %44 : vector<2xf32> to vector<2x1xf32>
    %cst_12 = arith.constant 1.000000e+01 : f32
    %46 = vector.broadcast %cst_12 : f32 to vector<2x256xf32>
    %47 = arith.mulf %46, %18 : vector<2x256xf32>
    %48 = math.exp %47 : vector<2x256xf32>
    %49 = arith.mulf %48, %43 : vector<2x256xf32>
    %cst_13 = arith.constant dense<0.000000e+00> : vector<2xf32>
    %50 = vector.multi_reduction <add>, %49, %cst_13 [1] : vector<2x256xf32> to vector<2xf32>
    %51 = vector.shape_cast %50 : vector<2xf32> to vector<2x1xf32>
    %cst_14 = arith.constant 9.99999997E-7 : f32
    %52 = vector.broadcast %cst_14 : f32 to vector<2x1xf32>
    %53 = arith.addf %51, %52 : vector<2x1xf32>
    %54 = math.log %53 : vector<2x1xf32>
    %cst_15 = arith.constant 1.000000e-01 : f32
    %55 = vector.broadcast %cst_15 : f32 to vector<2x1xf32>
    %56 = arith.mulf %55, %54 : vector<2x1xf32>
    %cst_16 = arith.constant 0.000000e+00 : f32
    %57 = vector.broadcast %cst_16 : f32 to vector<2x1xf32>
    %58 = arith.cmpf ogt, %45, %57 : vector<2x1xf32>
    %cst_17 = arith.constant 0.000000e+00 : f32
    %59 = vector.broadcast %cst_17 : f32 to vector<2x1xf32>
    %60 = arith.select %58, %56, %59 : vector<2x1xi1>, vector<2x1xf32>
    %cst_18 = arith.constant 9.99999997E-7 : f32
    %61 = vector.broadcast %cst_18 : f32 to vector<2x1xf32>
    %62 = arith.addf %60, %61 : vector<2x1xf32>
    %63 = math.log %62 : vector<2x1xf32>
    %cst_19 = arith.constant 0.000000e+00 : f32
    %64 = vector.broadcast %cst_19 : f32 to vector<2x1xf32>
    %65 = arith.subf %64, %63 : vector<2x1xf32>
    %cst_20 = arith.constant 0.000000e+00 : f32
    %66 = vector.broadcast %cst_20 : f32 to vector<2x256xf32>
    %67 = arith.maximumf %1, %66 : vector<2x256xf32>
    %68 = arith.mulf %1, %3 : vector<2x256xf32>
    %69 = arith.subf %67, %68 : vector<2x256xf32>
    %cst_21 = arith.constant 1.000000e+00 : f32
    %70 = vector.broadcast %cst_21 : f32 to vector<2x256xf32>
    %71 = arith.addf %70, %7 : vector<2x256xf32>
    %72 = math.log %71 : vector<2x256xf32>
    %73 = arith.addf %69, %72 : vector<2x256xf32>
    %cst_22 = arith.constant dense<0.000000e+00> : vector<2xf32>
    %74 = vector.multi_reduction <add>, %73, %cst_22 [1] : vector<2x256xf32> to vector<2xf32>
    %75 = vector.shape_cast %74 : vector<2xf32> to vector<2x1xf32>
    %76 = tpu.iota {dimensions = array<i32: 1>} : vector<2x128xi32>
    %c0_i32 = arith.constant 0 : i32
    %77 = vector.broadcast %c0_i32 : i32 to vector<2x128xi32>
    %78 = arith.cmpi eq, %76, %77 : vector<2x128xi32>
    %c1_i32_23 = arith.constant 1 : i32
    %79 = vector.broadcast %c1_i32_23 : i32 to vector<2x128xi32>
    %80 = arith.cmpi eq, %76, %79 : vector<2x128xi32>
    %c2_i32 = arith.constant 2 : i32
    %81 = vector.broadcast %c2_i32 : i32 to vector<2x128xi32>
    %82 = arith.cmpi eq, %76, %81 : vector<2x128xi32>
    %cst_24 = arith.constant 0.000000e+00 : f32
    %83 = vector.shape_cast %75 : vector<2x1xf32> to vector<2x1xf32>
    %84 = vector.broadcast %83 : vector<2x1xf32> to vector<2x128xf32>
    %85 = vector.broadcast %cst_24 : f32 to vector<2x128xf32>
    %86 = arith.select %82, %84, %85 : vector<2x128xi1>, vector<2x128xf32>
    %87 = vector.shape_cast %45 : vector<2x1xf32> to vector<2x1xf32>
    %88 = vector.broadcast %87 : vector<2x1xf32> to vector<2x128xf32>
    %89 = arith.select %80, %88, %86 : vector<2x128xi1>, vector<2x128xf32>
    %90 = vector.shape_cast %65 : vector<2x1xf32> to vector<2x1xf32>
    %91 = vector.broadcast %90 : vector<2x1xf32> to vector<2x128xf32>
    %92 = arith.select %78, %91, %89 : vector<2x128xi1>, vector<2x128xf32>
    %c0_25 = arith.constant 0 : index
    %c0_26 = arith.constant 0 : index
    %c0_27 = arith.constant 0 : index
    %93 = vector.load %arg4[%c0_25, %c0_26, %c0_27] : memref<1x2x128xf32, #tpu.memory_space<vmem>>, vector<1x2x128xf32>
    %94 = vector.shape_cast %93 : vector<1x2x128xf32> to vector<2x128xf32>
    %95 = vector.shape_cast %92 : vector<2x128xf32> to vector<1x2x128xf32>
    tpu.vector_store %arg4[%c0_25, %c0_26, %c0_27], %95 {strides = array<i32>} : memref<1x2x128xf32, #tpu.memory_space<vmem>>, vector<1x2x128xf32>,
    return
  }
  func.func @transform_0(%arg0: i32) -> (i32, i32) {
    %c0_i32 = arith.constant 0 : i32
    %c0_i32_0 = arith.constant 0 : i32
    %c0_i32_1 = arith.constant 0 : i32
    return %c0_i32, %c0_i32_0 : i32, i32
  }
  func.func @transform_1(%arg0: i32) -> (i32, i32, i32) {
    %c0_i32 = arith.constant 0 : i32
    %c0_i32_0 = arith.constant 0 : i32
    %c0_i32_1 = arith.constant 0 : i32
    return %arg0, %c0_i32, %c0_i32_0 : i32, i32, i32
  }
  func.func @transform_2(%arg0: i32) -> (i32, i32, i32) {
    %c0_i32 = arith.constant 0 : i32
    %c0_i32_0 = arith.constant 0 : i32
    %c0_i32_1 = arith.constant 0 : i32
    return %arg0, %c0_i32, %c0_i32_0 : i32, i32, i32
  }
  func.func @transform_3(%arg0: i32) -> (i32, i32, i32) {
    %c0_i32 = arith.constant 0 : i32
    %c0_i32_0 = arith.constant 0 : i32
    %c0_i32_1 = arith.constant 0 : i32
    return %arg0, %c0_i32, %c0_i32_0 : i32, i32, i32
  }
}

</mosaic_0001>

<llo_original>
// kernel: tpu_custom_call.1
$region0: #{tpu_custom_call.1}
  #allocation0 [shape = 'u32[]', space=smem, size = 0x4, offset = 0x4, fixed_abs, tag = 'smem constant byte address 0x4 - core index']
  #allocation1 [shape = 'u32[72,128]{1,0:T(1,128)}', space=vmem, size = 0x9000, scoped, tag = 'internal scratch']
  %s0 = inlined_call_operand.hbm [shape: f32[4,256], index: 0, kind: input, shape index: {}]
  %s1 = inlined_call_operand.hbm [shape: f32[2,2,256], index: 1, kind: input, shape index: {}]
  %s2 = inlined_call_operand.hbm [shape: f32[2,2,256], index: 2, kind: input, shape index: {}]
  %s3 = inlined_call_operand.hbm [shape: f32[2,2,128], index: 3, kind: output, shape index: {}]
  %s4 = sld [smem:[#allocation0]]
  $region57: #{tpu_custom_call.1} parent=0
    _
  %s6 = ssub.s32 1, %s4
  %s7 = scalar_select 0, %s6, %s4
  $region1: #{tpu_custom_call.1} parent=0
    #allocation2 [shape = 'u8[4096]{0}', space=vmem, size = 0x1000, scoped, tag = 'input window, operand 0, single buffered']
    #allocation3 [shape = 's32[2]{0}', space=sflag, size = 0x8, scoped, tag = 'scoped memory for tpu_custom_call.1']
    #allocation4 [shape = 's32[2]{0}', space=sflag, size = 0x8, scoped, tag = 'scoped memory for tpu_custom_call.1']
    #allocation5 [shape = 'u8[4096]{0}', space=vmem, size = 0x1000, scoped, tag = 'input window, operand 1']
    #allocation6 [shape = 's32[2]{0}', space=sflag, size = 0x8, scoped, tag = 'scoped memory for tpu_custom_call.1']
    #allocation7 [shape = 'u8[4096]{0}', space=vmem, size = 0x1000, scoped, tag = 'input window, operand 2']
    #allocation8 [shape = 'u8[2048]{0}', space=vmem, size = 0x800, scoped, tag = 'output window, operand 0']
    %8 = vsyncpa [#allocation3], 0
    %9 = vsyncpa [#allocation6], 0
    %s10 = scalar_lea.sflag [#allocation6], 1
    %11 = vsyncpa %s10, 0
    %12 = vsyncpa [#allocation4], 0
    %s13 = scalar_lea.sflag [#allocation4], 1
    %14 = vsyncpa %s13, 0
    loop: start=0, step=1, limit=4
    $region2: #{tpu_custom_call.1} parent=1 // loop_pre_header
      _
    $region3: #{tpu_custom_call.1} parent=1 // loop_header
      %s16 = sphi 0, %s20
      %p17 = scmp.ge.s32.totalorder %s16, 4
      %s24 = sphi 0, %s24
      %s26 = sphi 0, %s24
      %s27 = sphi 0, %s26
      %s41 = sphi 0, %s27
      %s47 = sphi 0, %s49
      %s50 = sphi 0, %s47
      %s51 = sphi 0, %s50
      %s67 = sphi 0, %s51
      %s73 = sphi 0, %s75
      %s76 = sphi 0, %s73
      %s77 = sphi 0, %s76
      %s93 = sphi 0, %s77
      %s99 = sphi 0, %s101
      %s102 = sphi 0, %s99
      %s103 = sphi 0, %s102
      %s119 = sphi 0, %s103
    $region4: #{tpu_custom_call.1} parent=1 // loop_header_branch
      %19 = sbr.rel (%p17) target = $region8
    $region5: #{tpu_custom_call.1} parent=1 // loop_body
      %s21 = ssub.s32 %s16, 1
      %s22 = ssub.s32 %s16, 2
      %s23 = sadd.s32 %s16, 1
      %s25 = sadd.s32 %s24, 1
      %p28 = scmp.eq.s32.totalorder %s16, 1
      %p29 = scmp.ne.s32.totalorder %s24, %s26
      %p30 = scmp.eq.s32.totalorder %s16, 0
      %p31 = por %p29, %p30
      %p32 = scmp.ne.s32.totalorder %s24, %s26
      %p33 = scmp.eq.s32.totalorder %s21, 1
      %p34 = por %p32, %p33
      %p35 = scmp.ne.s32.totalorder %s26, %s27
      %p36 = scmp.eq.s32.totalorder %s21, 0
      %p37 = por %p35, %p36
      %p38 = scmp.ne.s32.totalorder %s26, %s27
      %p39 = scmp.eq.s32.totalorder %s22, 1
      %p40 = por %p38, %p39
      %p42 = scmp.ne.s32.totalorder %s27, %s41
      %p43 = scmp.eq.s32.totalorder %s22, 0
      %p44 = por %p42, %p43
      %s45 = ssub.s32 %s16, %s23
      %p46 = scmp.eq.s32.totalorder %s45, 0
      %s48 = sadd.s32 %s47, 1
      %s49 = scalar_select %p46, %s47, %s48
      %p52 = pneg %p46
      %p53 = scmp.eq.s32.totalorder %s16, 1
      %p54 = por %p52, %p53
      %p55 = scmp.ne.s32.totalorder %s47, %s50
      %p56 = scmp.eq.s32.totalorder %s16, 0
      %p57 = por %p55, %p56
      %p58 = scmp.ne.s32.totalorder %s47, %s50
      %p59 = scmp.eq.s32.totalorder %s21, 1
      %p60 = por %p58, %p59
      %p61 = scmp.ne.s32.totalorder %s50, %s51
      %p62 = scmp.eq.s32.totalorder %s21, 0
      %p63 = por %p61, %p62
      %p64 = scmp.ne.s32.totalorder %s50, %s51
      %p65 = scmp.eq.s32.totalorder %s22, 1
      %p66 = por %p64, %p65
      %p68 = scmp.ne.s32.totalorder %s51, %s67
      %p69 = scmp.eq.s32.totalorder %s22, 0
      %p70 = por %p68, %p69
      %s71 = ssub.s32 %s16, %s23
      %p72 = scmp.eq.s32.totalorder %s71, 0
      %s74 = sadd.s32 %s73, 1
      %s75 = scalar_select %p72, %s73, %s74
      %p78 = pneg %p72
      %p79 = scmp.eq.s32.totalorder %s16, 1
      %p80 = por %p78, %p79
      %p81 = scmp.ne.s32.totalorder %s73, %s76
      %p82 = scmp.eq.s32.totalorder %s16, 0
      %p83 = por %p81, %p82
      %p84 = scmp.ne.s32.totalorder %s73, %s76
      %p85 = scmp.eq.s32.totalorder %s21, 1
      %p86 = por %p84, %p85
      %p87 = scmp.ne.s32.totalorder %s76, %s77
      %p88 = scmp.eq.s32.totalorder %s21, 0
      %p89 = por %p87, %p88
      %p90 = scmp.ne.s32.totalorder %s76, %s77
      %p91 = scmp.eq.s32.totalorder %s22, 1
      %p92 = por %p90, %p91
      %p94 = scmp.ne.s32.totalorder %s77, %s93
      %p95 = scmp.eq.s32.totalorder %s22, 0
      %p96 = por %p94, %p95
      %s97 = ssub.s32 %s16, %s23
      %p98 = scmp.eq.s32.totalorder %s97, 0
      %s100 = sadd.s32 %s99, 1
      %s101 = scalar_select %p98, %s99, %s100
      %p104 = pneg %p98
      %p105 = scmp.eq.s32.totalorder %s16, 1
      %p106 = por %p104, %p105
      %p107 = scmp.ne.s32.totalorder %s99, %s102
      %p108 = scmp.eq.s32.totalorder %s16, 0
      %p109 = por %p107, %p108
      %p110 = scmp.ne.s32.totalorder %s99, %s102
      %p111 = scmp.eq.s32.totalorder %s21, 1
      %p112 = por %p110, %p111
      %p113 = scmp.ne.s32.totalorder %s102, %s103
      %p114 = scmp.eq.s32.totalorder %s21, 0
      %p115 = por %p113, %p114
      %p116 = scmp.ne.s32.totalorder %s102, %s103
      %p117 = scmp.eq.s32.totalorder %s22, 1
      %p118 = por %p116, %p117
      %p120 = scmp.ne.s32.totalorder %s103, %s119
      %p121 = scmp.eq.s32.totalorder %s22, 0
      %p122 = por %p120, %p121
      %p123 = scmp.le.s32.totalorder 1, %s16
      %p124 = scmp.lt.s32.totalorder %s16, 3
      %p125 = pnand %p123, %p124
      %p126 = pneg %p125
      // Predicated region
      $region9: #{tpu_custom_call.1} parent=5 // pred_check
        _
      $region10: #{tpu_custom_call.1} parent=5 // pred_check_branch
        %128 = sbr.rel (%p125) target = $region12
      $region11: #{tpu_custom_call.1} parent=5 // pred_region
        %s129 = ssub.s32 %s16, 1
        // Predicated region
        $region13: #{tpu_custom_call.1} parent=11 // pred_check
          %p130 = pneg %p37
        $region14: #{tpu_custom_call.1} parent=11 // pred_check_branch
          %132 = sbr.rel (%p130) target = $region16
        $region15: #{tpu_custom_call.1} parent=11 // pred_region
          %134 = vsyncadd [#allocation3], 0
          %s136 = sshll.u32 %s0, 4
          %s137 = int_to_ptr.hbm [resolvable:$true] %s136
          %s138 = sshll.u32 [#allocation2], 4
          %s139 = int_to_ptr.vmem [resolvable:$true] %s138
          %141 = dma.hbm_to_vmem [thread:$0]  %s137, 128, %s139, [#allocation3]
        $region16: #{tpu_custom_call.1} parent=11 // pred_fallthru
          _
      $region12: #{tpu_custom_call.1} parent=5 // pred_fallthru
        _
      %p142 = scmp.lt.s32.totalorder %s16, 2
      // Predicated region
      $region17: #{tpu_custom_call.1} parent=5 // pred_check
        %p143 = pneg %p142
      $region18: #{tpu_custom_call.1} parent=5 // pred_check_branch
        %145 = sbr.rel (%p143) target = $region20
      $region19: #{tpu_custom_call.1} parent=5 // pred_region
        // Predicated region
        $region21: #{tpu_custom_call.1} parent=19 // pred_check
          %p146 = pneg %p57
        $region22: #{tpu_custom_call.1} parent=19 // pred_check_branch
          %148 = sbr.rel (%p146) target = $region24
        $region23: #{tpu_custom_call.1} parent=19 // pred_region
          %s149 = sand.u32 %s16, 1
          %s150 = scalar_lea.sflag [#allocation6], %s149
          %s151 = sand.u32 %s47, 1
          %s152 = smul.addr %s151, 4
          %s153 = scalar_lea.vmem [#allocation5], %s152
          %155 = vsyncadd %s150, 0
          %s156 = smul.addr %s16, 2
          %s157 = smul.addr %s156, 2
          %s158 = scalar_lea.hbm %s1, %s157
          %s160 = sshll.u32 %s158, 4
          %s161 = int_to_ptr.hbm [resolvable:$true] %s160
          %s162 = sshll.u32 %s153, 4
          %s163 = int_to_ptr.vmem [resolvable:$true] %s162
          %165 = dma.hbm_to_vmem [thread:$0]  %s161, 64, %s163, %s150
        $region24: #{tpu_custom_call.1} parent=19 // pred_fallthru
          _
        // Predicated region
        $region25: #{tpu_custom_call.1} parent=19 // pred_check
          %p166 = pneg %p83
        $region26: #{tpu_custom_call.1} parent=19 // pred_check_branch
          %168 = sbr.rel (%p166) target = $region28
        $region27: #{tpu_custom_call.1} parent=19 // pred_region
          %s169 = sand.u32 %s16, 1
          %s170 = scalar_lea.sflag [#allocation6], %s169
          %s171 = sand.u32 %s73, 1
          %s172 = smul.addr %s171, 4
          %s173 = scalar_lea.vmem [#allocation7], %s172
          %175 = vsyncadd %s170, 0
          %s176 = smul.addr %s16, 2
          %s177 = smul.addr %s176, 2
          %s178 = scalar_lea.hbm %s2, %s177
          %s180 = sshll.u32 %s178, 4
          %s181 = int_to_ptr.hbm [resolvable:$true] %s180
          %s182 = sshll.u32 %s173, 4
          %s183 = int_to_ptr.vmem [resolvable:$true] %s182
          %185 = dma.hbm_to_vmem [thread:$0]  %s181, 64, %s183, %s170
        $region28: #{tpu_custom_call.1} parent=19 // pred_fallthru
          _
      $region20: #{tpu_custom_call.1} parent=5 // pred_fallthru
        _
      %p186 = scmp.le.s32.totalorder 1, %s16
      %p187 = scmp.lt.s32.totalorder %s16, 3
      %p188 = pnand %p186, %p187
      %p189 = pneg %p188
      // Predicated region
      $region29: #{tpu_custom_call.1} parent=5 // pred_check
        _
      $region30: #{tpu_custom_call.1} parent=5 // pred_check_branch
        %191 = sbr.rel (%p188) target = $region32
      $region31: #{tpu_custom_call.1} parent=5 // pred_region
        %s192 = ssub.s32 %s16, 1
        // Predicated region
        $region33: #{tpu_custom_call.1} parent=31 // pred_check
          %p193 = pneg %p37
        $region34: #{tpu_custom_call.1} parent=31 // pred_check_branch
          %195 = sbr.rel (%p193) target = $region36
        $region35: #{tpu_custom_call.1} parent=31 // pred_region
          %197 = dma.done [#allocation3], 128
        $region36: #{tpu_custom_call.1} parent=31 // pred_fallthru
          _
        %s198 = sand.u32 %s21, 1
        %s199 = scalar_lea.sflag [#allocation6], %s198
        %s200 = sand.u32 %s50, 1
        %s201 = smul.addr %s200, 4
        %s202 = scalar_lea.vmem [#allocation5], %s201
        // Predicated region
        $region37: #{tpu_custom_call.1} parent=31 // pred_check
          %p203 = pneg %p63
        $region38: #{tpu_custom_call.1} parent=31 // pred_check_branch
          %205 = sbr.rel (%p203) target = $region40
        $region39: #{tpu_custom_call.1} parent=31 // pred_region
          %207 = dma.done %s199, 64
        $region40: #{tpu_custom_call.1} parent=31 // pred_fallthru
          _
        %s208 = sand.u32 %s21, 1
        %s209 = scalar_lea.sflag [#allocation6], %s208
        %s210 = sand.u32 %s76, 1
        %s211 = smul.addr %s210, 4
        %s212 = scalar_lea.vmem [#allocation7], %s211
        // Predicated region
        $region41: #{tpu_custom_call.1} parent=31 // pred_check
          %p213 = pneg %p89
        $region42: #{tpu_custom_call.1} parent=31 // pred_check_branch
          %215 = sbr.rel (%p213) target = $region44
        $region43: #{tpu_custom_call.1} parent=31 // pred_region
          %217 = dma.done %s209, 64
        $region44: #{tpu_custom_call.1} parent=31 // pred_fallthru
          _
        %p218 = pneg %p37
        %p219 = pneg %p34
        %s220 = sand.u32 %s21, 1
        %s221 = scalar_lea.sflag [#allocation6], %s220
        %s222 = sand.u32 %s50, 1
        %s223 = smul.addr %s222, 4
        %s224 = scalar_lea.vmem [#allocation5], %s223
        %p225 = pneg %p63
        %p226 = pneg %p60
        %s227 = sand.u32 %s21, 1
        %s228 = scalar_lea.sflag [#allocation6], %s227
        %s229 = sand.u32 %s76, 1
        %s230 = smul.addr %s229, 4
        %s231 = scalar_lea.vmem [#allocation7], %s230
        %p232 = pneg %p89
        %p233 = pneg %p86
        %p234 = pneg %p115
        %p235 = pneg %p112
        %s236 = sand.u32 %s102, 1
        %s237 = scalar_lea.sflag [#allocation4], %s236
        %s238 = sand.u32 %s102, 1
        %s239 = smul.addr %s238, 2
        %s240 = scalar_lea.vmem [#allocation8], %s239
        %v241 = vld [vmem:[%s202] sm:$0xf]
        %v242 = vld [vmem:[%s212] sm:$0xf]
        %v243 = vand.u32 2147483647, %v241
        %v244 = vsub.f32 0.0, %v243
        %v245 = vmul.f32 %v244, 1.442695
        %v246 = vpow.pop %v245
        %v247 = vadd.f32 %v246, 1.0
        %v248 = vrcp.pop %v247
        %v249 = vmul.f32 %v247, %v248
        %v250 = vsub.f32 2.0, %v249
        %v251 = vmul.f32 %v248, %v250
        %vm252 = vcmp.ge.f32.partialorder %v241, 0.0
        %v253 = vmul.f32 %v246, %v251
        %v254 = vsel %vm252, %v251, %v253
        %v255 = vld [vmem:[#allocation2] sm:$0xff]
        %257 = vst [vmem:[#allocation1] ss:$4 sm:$0xff] %v242
        %v258 = vld.sshfl [vmem:[#allocation1] sm:$0xff pattern:$0x73625140]
        %v259 = vld.sshfl [vmem:[#allocation1 + $0x8] sm:$0xff pattern:$0x73625140]
        %262 = vrot.lane.b32.xlu0 %v258, 1
        %v263 = vpop.permute.xlu0 %262
        %264 = vrot.lane.b32.xlu0 %v259, 1
        %v265 = vpop.permute.xlu0 %264
        %v266 = vlaneseq
        %v267 = vand.u32 %v266, 127
        %vm268 = vcmp.lt.s32.totalorder %v267, 1
        %v269 = vsel %vm268, %v263, %v265
        %v270 = vsel %vm268, %v265, %v263
        %v272 = vperm.slane %v255, 0
        %v273 = vperm.slane %v255, 4
        %v276 = vperm.slane %v272, 0
        %v277 = vperm.slane %v273, 0
        %v278 = vmul.f32 %v270, %v276
        %v279 = vmul.f32 %v269, %v277
        %280 = vst [vmem:[#allocation1] ss:$4 sm:$0xff] %v242
        %v281 = vld.sshfl [vmem:[#allocation1] sm:$0xff pattern:$0x73625140]
        %v282 = vld.sshfl [vmem:[#allocation1 + $0x8] sm:$0xff pattern:$0x73625140]
        %285 = vrot.lane.b32.xlu0 %v281, 127
        %v286 = vpop.permute.xlu0 %285
        %287 = vrot.lane.b32.xlu0 %v282, 127
        %v288 = vpop.permute.xlu0 %287
        %vm289 = vcmp.lt.s32.totalorder %v267, 127
        %v290 = vsel %vm289, %v286, %v288
        %v291 = vsel %vm289, %v288, %v286
        %v292 = vperm.slane %v255, 1
        %v293 = vperm.slane %v255, 5
        %v296 = vperm.slane %v292, 1
        %v297 = vperm.slane %v293, 1
        %v298 = vmul.f32 %v290, %v296
        %v299 = vmul.f32 %v291, %v297
        %300 = vst [vmem:[#allocation1] ss:$4 sm:$0xff] %v242
        %v301 = vld.sshfl [vmem:[#allocation1] sm:$0xff pattern:$0x73625140]
        %v302 = vld.sshfl [vmem:[#allocation1 + $0x8] sm:$0xff pattern:$0x73625140]
        %v305 = vmax.f32 %v278, %v301
        %v306 = vmax.f32 %v279, %v302
        %v307 = vmax.f32 %v305, %v298
        %v308 = vmax.f32 %v306, %v299
        %309 = vrot.lane.b32.xlu0 %v307, 16
        %v310 = vpop.permute.xlu0 %309
        %311 = vrot.lane.b32.xlu0 %v308, 16
        %v312 = vpop.permute.xlu0 %311
        %vm313 = vcmp.lt.s32.totalorder %v267, 16
        %v314 = vsel %vm313, %v310, %v312
        %v315 = vsel %vm313, %v312, %v310
        %v316 = vperm.slane %v255, 2
        %v317 = vperm.slane %v255, 6
        %v320 = vperm.slane %v316, 2
        %v321 = vperm.slane %v317, 2
        %v322 = vmul.f32 %v315, %v320
        %v323 = vmul.f32 %v314, %v321
        %324 = vrot.lane.b32.xlu0 %v307, 112
        %v325 = vpop.permute.xlu0 %324
        %326 = vrot.lane.b32.xlu0 %v308, 112
        %v327 = vpop.permute.xlu0 %326
        %vm328 = vcmp.lt.s32.totalorder %v267, 112
        %v329 = vsel %vm328, %v325, %v327
        %v330 = vsel %vm328, %v327, %v325
        %v331 = vperm.slane %v255, 3
        %v332 = vperm.slane %v255, 7
        %v335 = vperm.slane %v331, 3
        %v336 = vperm.slane %v332, 3
        %v337 = vmul.f32 %v329, %v335
        %v338 = vmul.f32 %v330, %v336
        %v339 = vmax.f32 %v322, %v307
        %v340 = vmax.f32 %v323, %v308
        %v341 = vmax.f32 %v339, %v337
        %v342 = vmax.f32 %v340, %v338
        %vm343 = vcmp.gt.f32.partialorder %v341, 0.5
        %vm344 = vcmp.gt.f32.partialorder %v342, 0.5
        %v345 = vsel %vm343, 1, 0
        %v346 = vsel %vm344, 1, 0
        %v347 = vcvt.s32.f32 %v345
        %v348 = vcvt.s32.f32 %v346
        %vm349 = vcmask 1041408
        %v350 = vsel %vm349, %v347, 0.0
        %v351 = vsel %vm349, %v348, 0.0
        %v352 = vadd.f32 %v350, %v351
        %353 = vadd.xlane.f32.xlu0 %v352
        %v354 = vpop.xlane.xlu0 %353
        %v355 = vmul.f32 %v254, 10.0
        %v356 = vmul.f32 %v355, 1.442695
        %v357 = vpow.pop %v356
        %v360 = vrot.slane %v348, 6
        %v361 = vsel %vm349, %v347, %v360
        %v363 = vmul.f32 %v357, %v361
        %365 = vst [vmem:[#allocation1] ss:$4 sm:$0xff] %v363
        %v366 = vld.sshfl [vmem:[#allocation1] sm:$0xff pattern:$0x73625140]
        %v367 = vld.sshfl [vmem:[#allocation1 + $0x8] sm:$0xff pattern:$0x73625140]
        %v370 = vsel %vm349, %v366, 0.0
        %v371 = vsel %vm349, %v367, 0.0
        %v372 = vadd.f32 %v370, %v371
        %373 = vadd.xlane.f32.xlu0 %v372
        %v374 = vpop.xlane.xlu0 %373
        %v375 = vadd.f32 %v374, 1e-06
        %v376 = vlog2.pop %v375
        %v377 = vmul.f32 %v376, 0.6931472
        %v378 = vmul.f32 %v377, 0.1
        %vm379 = vcmp.gt.f32.partialorder %v354, 0.0
        %v380 = vsel %vm379, %v378, 0.0
        %v381 = vadd.f32 %v380, 1e-06
        %v382 = vlog2.pop %v381
        %v383 = vmul.f32 %v382, 0.6931472
        %v384 = vsub.f32 0.0, %v383
        %v385 = vmax.f32 %v241, 0.0
        %v386 = vmul.f32 %v241, %v242
        %v387 = vsub.f32 %v385, %v386
        %v388 = vlog2.pop %v247
        %v389 = vmul.f32 %v388, 0.6931472
        %v390 = vadd.f32 %v387, %v389
        %392 = vst [vmem:[#allocation1] ss:$4 sm:$0xff] %v390
        %v393 = vld.sshfl [vmem:[#allocation1] sm:$0xff pattern:$0x73625140]
        %v394 = vld.sshfl [vmem:[#allocation1 + $0x8] sm:$0xff pattern:$0x73625140]
        %v397 = vsel %vm349, %v393, 0.0
        %v398 = vsel %vm349, %v394, 0.0
        %v399 = vadd.f32 %v397, %v398
        %400 = vadd.xlane.f32.xlu0 %v399
        %v401 = vpop.xlane.xlu0 %400
        %vm402 = vcmp.eq.s32.totalorder %v267, 0
        %vm403 = vcmp.eq.s32.totalorder %v267, 1
        %vm404 = vcmp.eq.s32.totalorder %v267, 2
        %v405 = vsel %vm404, %v401, 0.0
        %v406 = vsel %vm403, %v354, %v405
        %v407 = vsel %vm402, %v384, %v406
        %408 = vst [vmem:[%s240] sm:$0x3] %v407
        %s409 = sand.u32 %s102, 1
        %s410 = scalar_lea.sflag [#allocation4], %s409
        %s411 = sand.u32 %s102, 1
        %s412 = smul.addr %s411, 2
        %s413 = scalar_lea.vmem [#allocation8], %s412
        // Predicated region
        $region45: #{tpu_custom_call.1} parent=31 // pred_check
          %p414 = pneg %p112
        $region46: #{tpu_custom_call.1} parent=31 // pred_check_branch
          %416 = sbr.rel (%p414) target = $region48
        $region47: #{tpu_custom_call.1} parent=31 // pred_region
          %418 = vsyncadd %s410, 0
          %s419 = smul.addr %s21, 2
          %s420 = scalar_lea.hbm %s3, %s419
          %s422 = sshll.u32 %s413, 4
          %s423 = int_to_ptr.vmem [resolvable:$true] %s422
          %s424 = sshll.u32 %s420, 4
          %s425 = int_to_ptr.hbm [resolvable:$true] %s424
          %427 = dma.vmem_to_hbm [thread:$0]  %s423, 32, %s425, %s410
        $region48: #{tpu_custom_call.1} parent=31 // pred_fallthru
          _
      $region32: #{tpu_custom_call.1} parent=5 // pred_fallthru
        _
      %p428 = scmp.le.s32.totalorder 2, %s16
      // Predicated region
      $region49: #{tpu_custom_call.1} parent=5 // pred_check
        %p429 = pneg %p428
      $region50: #{tpu_custom_call.1} parent=5 // pred_check_branch
        %431 = sbr.rel (%p429) target = $region52
      $region51: #{tpu_custom_call.1} parent=5 // pred_region
        %s432 = ssub.s32 %s16, 2
        // Predicated region
        $region53: #{tpu_custom_call.1} parent=51 // pred_check
          %p433 = pneg %p118
        $region54: #{tpu_custom_call.1} parent=51 // pred_check_branch
          %435 = sbr.rel (%p433) target = $region56
        $region55: #{tpu_custom_call.1} parent=51 // pred_region
          %s436 = sand.u32 %s103, 1
          %s437 = scalar_lea.sflag [#allocation4], %s436
          %s438 = sand.u32 %s103, 1
          %s439 = smul.addr %s438, 2
          %s440 = scalar_lea.vmem [#allocation8], %s439
          %442 = dma.done %s437, 32
        $region56: #{tpu_custom_call.1} parent=51 // pred_fallthru
          _
      $region52: #{tpu_custom_call.1} parent=5 // pred_fallthru
        _
    $region6: #{tpu_custom_call.1} parent=1 // loop_footer
      %s20 = sadd.s32 1, %s16
    $region7: #{tpu_custom_call.1} parent=1 // loop_footer_branch
      %15 = sbr.rel target = $region3
    $region8: #{tpu_custom_call.1} parent=1 // loop_exit
      _
    %443 = vsyncpa [#allocation3], 1
    %s444 = scalar_lea.sflag [#allocation3], 1
    %445 = vsyncpa %s444, 1
    %446 = vsyncpa [#allocation6], 1
    %s447 = scalar_lea.sflag [#allocation6], 1
    %448 = vsyncpa %s447, 1
    %449 = vsyncpa [#allocation4], 1
    %s450 = scalar_lea.sflag [#allocation4], 1
    %451 = vsyncpa %s450, 1

</llo_original>
